<compile_context>
chip_gen: v5e
topology: v5e:2x2
jax: 0.10.0
libtpu: 0.0.40
codegen_flags: <defaults>
</compile_context>

<pallas_src>
import functools

import jax
import jax.numpy as jnp
from jax import lax
from jax.experimental import pallas as pl
from jax.experimental.pallas import tpu as pltpu


def _round_up(x, m):
    return ((x + m - 1) // m) * m


def _vmem_capacity_bytes():
    try:
        return int(pltpu.get_tpu_info().vmem_capacity_bytes)
    except Exception:
        return 64 * 1024 * 1024  # conservative (v7x-sized) fallback


def _bpr_rows(u, it, jt, weight_decay, inv_d):
    """Per-row loss: mean_d(-logsigmoid(u*(i-j)) + wd*(u^2+i^2+j^2))."""
    x = u * (it - jt)                                  # factored multiply
    # numerically stable -logsigmoid(x) = max(-x, 0) + log(1 + exp(-|x|))
    neg_logsig = jnp.maximum(-x, 0.0) + jnp.log(1.0 + jnp.exp(-jnp.abs(x)))
    elt = neg_logsig + weight_decay * (u * u + it * it + jt * jt)
    return jnp.sum(elt, axis=1) * inv_d                # (rows,)


# ----------------------------------------------------------------------------
# Fast path: tables resident in VMEM, in-VMEM row gather (no per-row DMAs).
# ----------------------------------------------------------------------------
def _bpr_vmem_kernel(u_idx, i_idx, j_idx,          # scalar prefetch (SMEM)
                     w_ref, h_ref,                 # resident tables (VMEM)
                     out_ref,                      # (1, TILE_B) output block
                     u_buf, i_buf, j_buf,          # (TILE_B, D) VMEM scratch
                     *, weight_decay, inv_d):
    tb = u_buf.shape[0]
    base = pl.program_id(0) * tb

    def gather(r, carry):                          # VMEM->VMEM row copies
        u_buf[pl.ds(r, 1), :] = w_ref[pl.ds(u_idx[base + r], 1), :]
        i_buf[pl.ds(r, 1), :] = h_ref[pl.ds(i_idx[base + r], 1), :]
        j_buf[pl.ds(r, 1), :] = h_ref[pl.ds(j_idx[base + r], 1), :]
        return carry

    lax.fori_loop(0, tb, gather, 0, unroll=8)      # unrolled for LLO scheduling

    row = _bpr_rows(u_buf[...].astype(jnp.float32),
                    i_buf[...].astype(jnp.float32),
                    j_buf[...].astype(jnp.float32),
                    weight_decay, inv_d)
    out_ref[...] = row[None, :].astype(out_ref.dtype)   # lane-dense store


# ----------------------------------------------------------------------------
# Large-table path: HBM row-gather DMAs, bulk per-chunk waits overlapped with
# compute.  Each grid step is self-contained -> the axis stays "parallel".
# ----------------------------------------------------------------------------
def _bpr_hbm_kernel(u_idx, i_idx, j_idx,           # scalar prefetch (SMEM)
                    w_hbm, h_hbm,                  # full tables (HBM / ANY)
                    out_ref,                       # (1, TILE_B) output block
                    u_buf, i_buf, j_buf,           # (TILE_B, D) VMEM scratch
                    sems,                          # DMA sems, shape (3, n_chunks)
                    *, weight_decay, inv_d, chunk):
    tb = u_buf.shape[0]
    n_chunks = tb // chunk
    base = pl.program_id(0) * tb

    # 1) Issue every row DMA up front; rows of chunk c signal sems[:, c].
    def start(r, carry):
        c = r // chunk
        pltpu.make_async_copy(w_hbm.at[pl.ds(u_idx[base + r], 1), :],
                              u_buf.at[pl.ds(r, 1), :], sems.at[0, c]).start()
        pltpu.make_async_copy(h_hbm.at[pl.ds(i_idx[base + r], 1), :],
                              i_buf.at[pl.ds(r, 1), :], sems.at[1, c]).start()
        pltpu.make_async_copy(h_hbm.at[pl.ds(j_idx[base + r], 1), :],
                              j_buf.at[pl.ds(r, 1), :], sems.at[2, c]).start()
        return carry

    lax.fori_loop(0, tb, start, 0, unroll=8)       # chunk-unrolled descriptor issue

    # 2) Per chunk: ONE bulk byte-counted wait per stream, then compute that
    #    chunk while the remaining chunks' DMAs are still in flight.
    for c in range(n_chunks):                      # static -> static lane slices
        off = c * chunk
        for buf, sidx in ((u_buf, 0), (i_buf, 1), (j_buf, 2)):
            slab = buf.at[pl.ds(off, chunk), :]
            # Wait only uses the destination byte count: one whole-slab wait
            # covers all `chunk` row copies that signaled sems[sidx, c].
            pltpu.make_async_copy(slab, slab, sems.at[sidx, c]).wait()
        row = _bpr_rows(u_buf[pl.ds(off, chunk), :].astype(jnp.float32),
                        i_buf[pl.ds(off, chunk), :].astype(jnp.float32),
                        j_buf[pl.ds(off, chunk), :].astype(jnp.float32),
                        weight_decay, inv_d)
        out_ref[:, off:off + chunk] = row[None, :].astype(out_ref.dtype)


# ----------------------------------------------------------------------------
# Host wrapper
# ----------------------------------------------------------------------------
def bpr_forward(W, H, u_idx, i_idx, j_idx, weight_decay):
    """W: [user_size, D], H: [item_size, D], indices: [B] -> loss [B] f32."""
    assert W.ndim == 2 and H.ndim == 2 and W.shape[1] == H.shape[1]
    D = int(W.shape[1])
    B = int(u_idx.shape[0])
    itemsize = jnp.dtype(W.dtype).itemsize

    vmem_cap = _vmem_capacity_bytes()
    vmem_limit = int(min(vmem_cap // 2, 64 * 1024 * 1024))
    table_budget = int(min(vmem_cap // 16, 4 * 1024 * 1024))
    gather_budget = int(min(vmem_cap // 8, 8 * 1024 * 1024))

    table_bytes = (int(W.shape[0]) + int(H.shape[0])) * D * itemsize
    use_vmem_tables = table_bytes <= table_budget

    # --- batch tiling: lane-aligned tiles; prefer >=2 tiles (v7x megacore) ---
    b8 = _round_up(max(B, 1), 8)
    max_tb = max(128, ((gather_budget // (3 * D * itemsize)) // 128) * 128)
    if b8 <= 128:
        tile_b = b8                                  # single tile == padded batch
    else:
        tile_b = min(512, max_tb, _round_up(b8, 128))
        if _round_up(b8, tile_b) == tile_b and tile_b > 128:
            tile_b = max(128, _round_up(tile_b // 2, 128))
    b_pad = _round_up(b8, tile_b)
    nb = b_pad // tile_b

    def pad_idx(idx):
        idx = jnp.asarray(idx, dtype=jnp.int32)
        if b_pad != B:
            idx = jnp.pad(idx, (0, b_pad - B))       # pad with row 0 (valid)
        return idx

    u_p, i_p, j_p = pad_idx(u_idx), pad_idx(i_idx), pad_idx(j_idx)

    common = dict(weight_decay=float(weight_decay), inv_d=1.0 / D)
    out_spec = pl.BlockSpec((1, tile_b), lambda b, *_: (0, b))
    compiler_params = pltpu.CompilerParams(
        dimension_semantics=("parallel",), vmem_limit_bytes=vmem_limit)
    cost = pl.CostEstimate(
        flops=10 * b_pad * D,
        transcendentals=2 * b_pad * D,
        bytes_accessed=(table_bytes if use_vmem_tables
                        else 3 * b_pad * D * itemsize) + 3 * b_pad * 4 + b_pad * 4)

    if use_vmem_tables:
        kernel = functools.partial(_bpr_vmem_kernel, **common)
        grid_spec = pltpu.PrefetchScalarGridSpec(
            num_scalar_prefetch=3,
            grid=(nb,),
            in_specs=[pl.BlockSpec(tuple(W.shape), lambda b, *_: (0, 0)),
                      pl.BlockSpec(tuple(H.shape), lambda b, *_: (0, 0))],
            out_specs=out_spec,
            scratch_shapes=[pltpu.VMEM((tile_b, D), W.dtype),
                            pltpu.VMEM((tile_b, D), H.dtype),
                            pltpu.VMEM((tile_b, D), H.dtype)])
    else:
        chunk = tile_b if tile_b <= 128 else 64
        kernel = functools.partial(_bpr_hbm_kernel, chunk=chunk, **common)
        grid_spec = pltpu.PrefetchScalarGridSpec(
            num_scalar_prefetch=3,
            grid=(nb,),
            in_specs=[pl.BlockSpec(memory_space=pl.ANY),       # W stays in HBM
                      pl.BlockSpec(memory_space=pl.ANY)],      # H stays in HBM
            out_specs=out_spec,
            scratch_shapes=[pltpu.VMEM((tile_b, D), W.dtype),
                            pltpu.VMEM((tile_b, D), H.dtype),
                            pltpu.VMEM((tile_b, D), H.dtype),
                            pltpu.SemaphoreType.DMA((3, tile_b // chunk))])

    out = pl.pallas_call(
        kernel,
        out_shape=jax.ShapeDtypeStruct((1, b_pad), jnp.float32),
        grid_spec=grid_spec,
        compiler_params=compiler_params,
        cost_estimate=cost,
    )(u_p, i_p, j_p, W, H)

    return out[0, :B]


def _reference(W, H, u_idx, i_idx, j_idx, weight_decay):
    u = W[u_idx]
    i = H[i_idx]
    j = H[j_idx]
    x = u * i - u * j
    log_prob = jnp.mean(jax.nn.log_sigmoid(x), axis=1)
    reg = weight_decay * (jnp.mean(u ** 2, axis=1)
                          + jnp.mean(i ** 2, axis=1)
                          + jnp.mean(j ** 2, axis=1))
    return -log_prob + reg


if __name__ == "__main__":
    user_size, item_size, emb_dim, batch = 64, 64, 32, 8
    weight_decay = 1e-5

    key = jax.random.PRNGKey(0)
    kW, kH, ku, ki, kj = jax.random.split(key, 5)

    # xavier_normal_: std = sqrt(2 / (fan_in + fan_out))
    std_W = (2.0 / (user_size + emb_dim)) ** 0.5
    std_H = (2.0 / (item_size + emb_dim)) ** 0.5
    W = jax.random.normal(kW, (user_size, emb_dim), jnp.float32) * std_W
    H = jax.random.normal(kH, (item_size, emb_dim), jnp.float32) * std_H

    u_idx = jax.random.randint(ku, (batch,), 0, user_size, dtype=jnp.int32)
    i_idx = jax.random.randint(ki, (batch,), 0, item_size, dtype=jnp.int32)
    j_idx = jax.random.randint(kj, (batch,), 0, item_size, dtype=jnp.int32)

    loss = jax.block_until_ready(
        bpr_forward(W, H, u_idx, i_idx, j_idx, weight_decay))
    ref = _reference(W, H, u_idx, i_idx, j_idx, weight_decay)

    assert loss.shape == (batch,)
    assert jnp.allclose(loss, ref, atol=1e-5, rtol=1e-5), (loss, ref)
    print("KERNEL_OK")
</pallas_src>

<mosaic_0001>
module attributes {stable_mosaic.version = 11 : i64} {
  func.func @_bpr_vmem_kernel(%arg0: i32, %arg1: memref<8xi32, #tpu.memory_space<smem>>, %arg2: memref<8xi32, #tpu.memory_space<smem>>, %arg3: memref<8xi32, #tpu.memory_space<smem>>, %arg4: memref<64x32xf32, #tpu.memory_space<vmem>>, %arg5: memref<64x32xf32, #tpu.memory_space<vmem>>, %arg6: memref<1x8xf32, #tpu.memory_space<vmem>>, %arg7: memref<8x32xf32, #tpu.memory_space<vmem>>, %arg8: memref<8x32xf32, #tpu.memory_space<vmem>>, %arg9: memref<8x32xf32, #tpu.memory_space<vmem>>) attributes {dimension_semantics = [#tpu.dimension_semantics<parallel>], iteration_bounds = array<i64: 1>, scalar_prefetch = 3 : i64, scratch_operands = 3 : i64, tpu.core_type = #tpu.core_type<tc>, window_params = [{pipeline_mode = #tpu.pipeline_mode<synchronous>, transform_indices = @transform_0, window_bounds = array<i64: 64, 32>}, {pipeline_mode = #tpu.pipeline_mode<synchronous>, transform_indices = @transform_1, window_bounds = array<i64: 64, 32>}, {transform_indices = @transform_2, window_bounds = array<i64: 1, 8>}]} {
    %c8_i32 = arith.constant 8 : i32
    %0 = arith.muli %arg0, %c8_i32 : i32
    %c0_i32 = arith.constant 0 : i32
    %1 = arith.addi %0, %c0_i32 : i32
    %2 = arith.index_cast %1 : i32 to index
    %3 = memref.load %arg1[%2] : memref<8xi32, #tpu.memory_space<smem>>
    %4 = arith.index_cast %3 : i32 to index
    %c0 = arith.constant 0 : index
    %5 = vector.load %arg4[%4, %c0] : memref<64x32xf32, #tpu.memory_space<vmem>>, vector<1x32xf32>
    %6 = arith.index_cast %c0_i32 : i32 to index
    %c0_0 = arith.constant 0 : index
    %7 = vector.load %arg7[%6, %c0_0] : memref<8x32xf32, #tpu.memory_space<vmem>>, vector<1x32xf32>
    tpu.vector_store %arg7[%6, %c0_0], %5 {strides = array<i32>} : memref<8x32xf32, #tpu.memory_space<vmem>>, vector<1x32xf32>,
    %8 = arith.addi %0, %c0_i32 : i32
    %9 = arith.index_cast %8 : i32 to index
    %10 = memref.load %arg2[%9] : memref<8xi32, #tpu.memory_space<smem>>
    %11 = arith.index_cast %10 : i32 to index
    %c0_1 = arith.constant 0 : index
    %12 = vector.load %arg5[%11, %c0_1] : memref<64x32xf32, #tpu.memory_space<vmem>>, vector<1x32xf32>
    %13 = arith.index_cast %c0_i32 : i32 to index
    %c0_2 = arith.constant 0 : index
    %14 = vector.load %arg8[%13, %c0_2] : memref<8x32xf32, #tpu.memory_space<vmem>>, vector<1x32xf32>
    tpu.vector_store %arg8[%13, %c0_2], %12 {strides = array<i32>} : memref<8x32xf32, #tpu.memory_space<vmem>>, vector<1x32xf32>,
    %15 = arith.addi %0, %c0_i32 : i32
    %16 = arith.index_cast %15 : i32 to index
    %17 = memref.load %arg3[%16] : memref<8xi32, #tpu.memory_space<smem>>
    %18 = arith.index_cast %17 : i32 to index
    %c0_3 = arith.constant 0 : index
    %19 = vector.load %arg5[%18, %c0_3] : memref<64x32xf32, #tpu.memory_space<vmem>>, vector<1x32xf32>
    %20 = arith.index_cast %c0_i32 : i32 to index
    %c0_4 = arith.constant 0 : index
    %21 = vector.load %arg9[%20, %c0_4] : memref<8x32xf32, #tpu.memory_space<vmem>>, vector<1x32xf32>
    tpu.vector_store %arg9[%20, %c0_4], %19 {strides = array<i32>} : memref<8x32xf32, #tpu.memory_space<vmem>>, vector<1x32xf32>,
    %c1_i32 = arith.constant 1 : i32
    %22 = arith.addi %0, %c1_i32 : i32
    %23 = arith.index_cast %22 : i32 to index
    %24 = memref.load %arg1[%23] : memref<8xi32, #tpu.memory_space<smem>>
    %25 = arith.index_cast %24 : i32 to index
    %c0_5 = arith.constant 0 : index
    %26 = vector.load %arg4[%25, %c0_5] : memref<64x32xf32, #tpu.memory_space<vmem>>, vector<1x32xf32>
    %27 = arith.index_cast %c1_i32 : i32 to index
    %c0_6 = arith.constant 0 : index
    %28 = vector.load %arg7[%27, %c0_6] : memref<8x32xf32, #tpu.memory_space<vmem>>, vector<1x32xf32>
    tpu.vector_store %arg7[%27, %c0_6], %26 {strides = array<i32>} : memref<8x32xf32, #tpu.memory_space<vmem>>, vector<1x32xf32>,
    %29 = arith.addi %0, %c1_i32 : i32
    %30 = arith.index_cast %29 : i32 to index
    %31 = memref.load %arg2[%30] : memref<8xi32, #tpu.memory_space<smem>>
    %32 = arith.index_cast %31 : i32 to index
    %c0_7 = arith.constant 0 : index
    %33 = vector.load %arg5[%32, %c0_7] : memref<64x32xf32, #tpu.memory_space<vmem>>, vector<1x32xf32>
    %34 = arith.index_cast %c1_i32 : i32 to index
    %c0_8 = arith.constant 0 : index
    %35 = vector.load %arg8[%34, %c0_8] : memref<8x32xf32, #tpu.memory_space<vmem>>, vector<1x32xf32>
    tpu.vector_store %arg8[%34, %c0_8], %33 {strides = array<i32>} : memref<8x32xf32, #tpu.memory_space<vmem>>, vector<1x32xf32>,
    %36 = arith.addi %0, %c1_i32 : i32
    %37 = arith.index_cast %36 : i32 to index
    %38 = memref.load %arg3[%37] : memref<8xi32, #tpu.memory_space<smem>>
    %39 = arith.index_cast %38 : i32 to index
    %c0_9 = arith.constant 0 : index
    %40 = vector.load %arg5[%39, %c0_9] : memref<64x32xf32, #tpu.memory_space<vmem>>, vector<1x32xf32>
    %41 = arith.index_cast %c1_i32 : i32 to index
    %c0_10 = arith.constant 0 : index
    %42 = vector.load %arg9[%41, %c0_10] : memref<8x32xf32, #tpu.memory_space<vmem>>, vector<1x32xf32>
    tpu.vector_store %arg9[%41, %c0_10], %40 {strides = array<i32>} : memref<8x32xf32, #tpu.memory_space<vmem>>, vector<1x32xf32>,
    %c2_i32 = arith.constant 2 : i32
    %43 = arith.addi %0, %c2_i32 : i32
    %44 = arith.index_cast %43 : i32 to index
    %45 = memref.load %arg1[%44] : memref<8xi32, #tpu.memory_space<smem>>
    %46 = arith.index_cast %45 : i32 to index
    %c0_11 = arith.constant 0 : index
    %47 = vector.load %arg4[%46, %c0_11] : memref<64x32xf32, #tpu.memory_space<vmem>>, vector<1x32xf32>
    %48 = arith.index_cast %c2_i32 : i32 to index
    %c0_12 = arith.constant 0 : index
    %49 = vector.load %arg7[%48, %c0_12] : memref<8x32xf32, #tpu.memory_space<vmem>>, vector<1x32xf32>
    tpu.vector_store %arg7[%48, %c0_12], %47 {strides = array<i32>} : memref<8x32xf32, #tpu.memory_space<vmem>>, vector<1x32xf32>,
    %50 = arith.addi %0, %c2_i32 : i32
    %51 = arith.index_cast %50 : i32 to index
    %52 = memref.load %arg2[%51] : memref<8xi32, #tpu.memory_space<smem>>
    %53 = arith.index_cast %52 : i32 to index
    %c0_13 = arith.constant 0 : index
    %54 = vector.load %arg5[%53, %c0_13] : memref<64x32xf32, #tpu.memory_space<vmem>>, vector<1x32xf32>
    %55 = arith.index_cast %c2_i32 : i32 to index
    %c0_14 = arith.constant 0 : index
    %56 = vector.load %arg8[%55, %c0_14] : memref<8x32xf32, #tpu.memory_space<vmem>>, vector<1x32xf32>
    tpu.vector_store %arg8[%55, %c0_14], %54 {strides = array<i32>} : memref<8x32xf32, #tpu.memory_space<vmem>>, vector<1x32xf32>,
    %57 = arith.addi %0, %c2_i32 : i32
    %58 = arith.index_cast %57 : i32 to index
    %59 = memref.load %arg3[%58] : memref<8xi32, #tpu.memory_space<smem>>
    %60 = arith.index_cast %59 : i32 to index
    %c0_15 = arith.constant 0 : index
    %61 = vector.load %arg5[%60, %c0_15] : memref<64x32xf32, #tpu.memory_space<vmem>>, vector<1x32xf32>
    %62 = arith.index_cast %c2_i32 : i32 to index
    %c0_16 = arith.constant 0 : index
    %63 = vector.load %arg9[%62, %c0_16] : memref<8x32xf32, #tpu.memory_space<vmem>>, vector<1x32xf32>
    tpu.vector_store %arg9[%62, %c0_16], %61 {strides = array<i32>} : memref<8x32xf32, #tpu.memory_space<vmem>>, vector<1x32xf32>,
    %c3_i32 = arith.constant 3 : i32
    %64 = arith.addi %0, %c3_i32 : i32
    %65 = arith.index_cast %64 : i32 to index
    %66 = memref.load %arg1[%65] : memref<8xi32, #tpu.memory_space<smem>>
    %67 = arith.index_cast %66 : i32 to index
    %c0_17 = arith.constant 0 : index
    %68 = vector.load %arg4[%67, %c0_17] : memref<64x32xf32, #tpu.memory_space<vmem>>, vector<1x32xf32>
    %69 = arith.index_cast %c3_i32 : i32 to index
    %c0_18 = arith.constant 0 : index
    %70 = vector.load %arg7[%69, %c0_18] : memref<8x32xf32, #tpu.memory_space<vmem>>, vector<1x32xf32>
    tpu.vector_store %arg7[%69, %c0_18], %68 {strides = array<i32>} : memref<8x32xf32, #tpu.memory_space<vmem>>, vector<1x32xf32>,
    %71 = arith.addi %0, %c3_i32 : i32
    %72 = arith.index_cast %71 : i32 to index
    %73 = memref.load %arg2[%72] : memref<8xi32, #tpu.memory_space<smem>>
    %74 = arith.index_cast %73 : i32 to index
    %c0_19 = arith.constant 0 : index
    %75 = vector.load %arg5[%74, %c0_19] : memref<64x32xf32, #tpu.memory_space<vmem>>, vector<1x32xf32>
    %76 = arith.index_cast %c3_i32 : i32 to index
    %c0_20 = arith.constant 0 : index
    %77 = vector.load %arg8[%76, %c0_20] : memref<8x32xf32, #tpu.memory_space<vmem>>, vector<1x32xf32>
    tpu.vector_store %arg8[%76, %c0_20], %75 {strides = array<i32>} : memref<8x32xf32, #tpu.memory_space<vmem>>, vector<1x32xf32>,
    %78 = arith.addi %0, %c3_i32 : i32
    %79 = arith.index_cast %78 : i32 to index
    %80 = memref.load %arg3[%79] : memref<8xi32, #tpu.memory_space<smem>>
    %81 = arith.index_cast %80 : i32 to index
    %c0_21 = arith.constant 0 : index
    %82 = vector.load %arg5[%81, %c0_21] : memref<64x32xf32, #tpu.memory_space<vmem>>, vector<1x32xf32>
    %83 = arith.index_cast %c3_i32 : i32 to index
    %c0_22 = arith.constant 0 : index
    %84 = vector.load %arg9[%83, %c0_22] : memref<8x32xf32, #tpu.memory_space<vmem>>, vector<1x32xf32>
    tpu.vector_store %arg9[%83, %c0_22], %82 {strides = array<i32>} : memref<8x32xf32, #tpu.memory_space<vmem>>, vector<1x32xf32>,
    %c4_i32 = arith.constant 4 : i32
    %85 = arith.addi %0, %c4_i32 : i32
    %86 = arith.index_cast %85 : i32 to index
    %87 = memref.load %arg1[%86] : memref<8xi32, #tpu.memory_space<smem>>
    %88 = arith.index_cast %87 : i32 to index
    %c0_23 = arith.constant 0 : index
    %89 = vector.load %arg4[%88, %c0_23] : memref<64x32xf32, #tpu.memory_space<vmem>>, vector<1x32xf32>
    %90 = arith.index_cast %c4_i32 : i32 to index
    %c0_24 = arith.constant 0 : index
    %91 = vector.load %arg7[%90, %c0_24] : memref<8x32xf32, #tpu.memory_space<vmem>>, vector<1x32xf32>
    tpu.vector_store %arg7[%90, %c0_24], %89 {strides = array<i32>} : memref<8x32xf32, #tpu.memory_space<vmem>>, vector<1x32xf32>,
    %92 = arith.addi %0, %c4_i32 : i32
    %93 = arith.index_cast %92 : i32 to index
    %94 = memref.load %arg2[%93] : memref<8xi32, #tpu.memory_space<smem>>
    %95 = arith.index_cast %94 : i32 to index
    %c0_25 = arith.constant 0 : index
    %96 = vector.load %arg5[%95, %c0_25] : memref<64x32xf32, #tpu.memory_space<vmem>>, vector<1x32xf32>
    %97 = arith.index_cast %c4_i32 : i32 to index
    %c0_26 = arith.constant 0 : index
    %98 = vector.load %arg8[%97, %c0_26] : memref<8x32xf32, #tpu.memory_space<vmem>>, vector<1x32xf32>
    tpu.vector_store %arg8[%97, %c0_26], %96 {strides = array<i32>} : memref<8x32xf32, #tpu.memory_space<vmem>>, vector<1x32xf32>,
    %99 = arith.addi %0, %c4_i32 : i32
    %100 = arith.index_cast %99 : i32 to index
    %101 = memref.load %arg3[%100] : memref<8xi32, #tpu.memory_space<smem>>
    %102 = arith.index_cast %101 : i32 to index
    %c0_27 = arith.constant 0 : index
    %103 = vector.load %arg5[%102, %c0_27] : memref<64x32xf32, #tpu.memory_space<vmem>>, vector<1x32xf32>
    %104 = arith.index_cast %c4_i32 : i32 to index
    %c0_28 = arith.constant 0 : index
    %105 = vector.load %arg9[%104, %c0_28] : memref<8x32xf32, #tpu.memory_space<vmem>>, vector<1x32xf32>
    tpu.vector_store %arg9[%104, %c0_28], %103 {strides = array<i32>} : memref<8x32xf32, #tpu.memory_space<vmem>>, vector<1x32xf32>,
    %c5_i32 = arith.constant 5 : i32
    %106 = arith.addi %0, %c5_i32 : i32
    %107 = arith.index_cast %106 : i32 to index
    %108 = memref.load %arg1[%107] : memref<8xi32, #tpu.memory_space<smem>>
    %109 = arith.index_cast %108 : i32 to index
    %c0_29 = arith.constant 0 : index
    %110 = vector.load %arg4[%109, %c0_29] : memref<64x32xf32, #tpu.memory_space<vmem>>, vector<1x32xf32>
    %111 = arith.index_cast %c5_i32 : i32 to index
    %c0_30 = arith.constant 0 : index
    %112 = vector.load %arg7[%111, %c0_30] : memref<8x32xf32, #tpu.memory_space<vmem>>, vector<1x32xf32>
    tpu.vector_store %arg7[%111, %c0_30], %110 {strides = array<i32>} : memref<8x32xf32, #tpu.memory_space<vmem>>, vector<1x32xf32>,
    %113 = arith.addi %0, %c5_i32 : i32
    %114 = arith.index_cast %113 : i32 to index
    %115 = memref.load %arg2[%114] : memref<8xi32, #tpu.memory_space<smem>>
    %116 = arith.index_cast %115 : i32 to index
    %c0_31 = arith.constant 0 : index
    %117 = vector.load %arg5[%116, %c0_31] : memref<64x32xf32, #tpu.memory_space<vmem>>, vector<1x32xf32>
    %118 = arith.index_cast %c5_i32 : i32 to index
    %c0_32 = arith.constant 0 : index
    %119 = vector.load %arg8[%118, %c0_32] : memref<8x32xf32, #tpu.memory_space<vmem>>, vector<1x32xf32>
    tpu.vector_store %arg8[%118, %c0_32], %117 {strides = array<i32>} : memref<8x32xf32, #tpu.memory_space<vmem>>, vector<1x32xf32>,
    %120 = arith.addi %0, %c5_i32 : i32
    %121 = arith.index_cast %120 : i32 to index
    %122 = memref.load %arg3[%121] : memref<8xi32, #tpu.memory_space<smem>>
    %123 = arith.index_cast %122 : i32 to index
    %c0_33 = arith.constant 0 : index
    %124 = vector.load %arg5[%123, %c0_33] : memref<64x32xf32, #tpu.memory_space<vmem>>, vector<1x32xf32>
    %125 = arith.index_cast %c5_i32 : i32 to index
    %c0_34 = arith.constant 0 : index
    %126 = vector.load %arg9[%125, %c0_34] : memref<8x32xf32, #tpu.memory_space<vmem>>, vector<1x32xf32>
    tpu.vector_store %arg9[%125, %c0_34], %124 {strides = array<i32>} : memref<8x32xf32, #tpu.memory_space<vmem>>, vector<1x32xf32>,
    %c6_i32 = arith.constant 6 : i32
    %127 = arith.addi %0, %c6_i32 : i32
    %128 = arith.index_cast %127 : i32 to index
    %129 = memref.load %arg1[%128] : memref<8xi32, #tpu.memory_space<smem>>
    %130 = arith.index_cast %129 : i32 to index
    %c0_35 = arith.constant 0 : index
    %131 = vector.load %arg4[%130, %c0_35] : memref<64x32xf32, #tpu.memory_space<vmem>>, vector<1x32xf32>
    %132 = arith.index_cast %c6_i32 : i32 to index
    %c0_36 = arith.constant 0 : index
    %133 = vector.load %arg7[%132, %c0_36] : memref<8x32xf32, #tpu.memory_space<vmem>>, vector<1x32xf32>
    tpu.vector_store %arg7[%132, %c0_36], %131 {strides = array<i32>} : memref<8x32xf32, #tpu.memory_space<vmem>>, vector<1x32xf32>,
    %134 = arith.addi %0, %c6_i32 : i32
    %135 = arith.index_cast %134 : i32 to index
    %136 = memref.load %arg2[%135] : memref<8xi32, #tpu.memory_space<smem>>
    %137 = arith.index_cast %136 : i32 to index
    %c0_37 = arith.constant 0 : index
    %138 = vector.load %arg5[%137, %c0_37] : memref<64x32xf32, #tpu.memory_space<vmem>>, vector<1x32xf32>
    %139 = arith.index_cast %c6_i32 : i32 to index
    %c0_38 = arith.constant 0 : index
    %140 = vector.load %arg8[%139, %c0_38] : memref<8x32xf32, #tpu.memory_space<vmem>>, vector<1x32xf32>
    tpu.vector_store %arg8[%139, %c0_38], %138 {strides = array<i32>} : memref<8x32xf32, #tpu.memory_space<vmem>>, vector<1x32xf32>,
    %141 = arith.addi %0, %c6_i32 : i32
    %142 = arith.index_cast %141 : i32 to index
    %143 = memref.load %arg3[%142] : memref<8xi32, #tpu.memory_space<smem>>
    %144 = arith.index_cast %143 : i32 to index
    %c0_39 = arith.constant 0 : index
    %145 = vector.load %arg5[%144, %c0_39] : memref<64x32xf32, #tpu.memory_space<vmem>>, vector<1x32xf32>
    %146 = arith.index_cast %c6_i32 : i32 to index
    %c0_40 = arith.constant 0 : index
    %147 = vector.load %arg9[%146, %c0_40] : memref<8x32xf32, #tpu.memory_space<vmem>>, vector<1x32xf32>
    tpu.vector_store %arg9[%146, %c0_40], %145 {strides = array<i32>} : memref<8x32xf32, #tpu.memory_space<vmem>>, vector<1x32xf32>,
    %c7_i32 = arith.constant 7 : i32
    %148 = arith.addi %0, %c7_i32 : i32
    %149 = arith.index_cast %148 : i32 to index
    %150 = memref.load %arg1[%149] : memref<8xi32, #tpu.memory_space<smem>>
    %151 = arith.index_cast %150 : i32 to index
    %c0_41 = arith.constant 0 : index
    %152 = vector.load %arg4[%151, %c0_41] : memref<64x32xf32, #tpu.memory_space<vmem>>, vector<1x32xf32>
    %153 = arith.index_cast %c7_i32 : i32 to index
    %c0_42 = arith.constant 0 : index
    %154 = vector.load %arg7[%153, %c0_42] : memref<8x32xf32, #tpu.memory_space<vmem>>, vector<1x32xf32>
    tpu.vector_store %arg7[%153, %c0_42], %152 {strides = array<i32>} : memref<8x32xf32, #tpu.memory_space<vmem>>, vector<1x32xf32>,
    %155 = arith.addi %0, %c7_i32 : i32
    %156 = arith.index_cast %155 : i32 to index
    %157 = memref.load %arg2[%156] : memref<8xi32, #tpu.memory_space<smem>>
    %158 = arith.index_cast %157 : i32 to index
    %c0_43 = arith.constant 0 : index
    %159 = vector.load %arg5[%158, %c0_43] : memref<64x32xf32, #tpu.memory_space<vmem>>, vector<1x32xf32>
    %160 = arith.index_cast %c7_i32 : i32 to index
    %c0_44 = arith.constant 0 : index
    %161 = vector.load %arg8[%160, %c0_44] : memref<8x32xf32, #tpu.memory_space<vmem>>, vector<1x32xf32>
    tpu.vector_store %arg8[%160, %c0_44], %159 {strides = array<i32>} : memref<8x32xf32, #tpu.memory_space<vmem>>, vector<1x32xf32>,
    %162 = arith.addi %0, %c7_i32 : i32
    %163 = arith.index_cast %162 : i32 to index
    %164 = memref.load %arg3[%163] : memref<8xi32, #tpu.memory_space<smem>>
    %165 = arith.index_cast %164 : i32 to index
    %c0_45 = arith.constant 0 : index
    %166 = vector.load %arg5[%165, %c0_45] : memref<64x32xf32, #tpu.memory_space<vmem>>, vector<1x32xf32>
    %167 = arith.index_cast %c7_i32 : i32 to index
    %c0_46 = arith.constant 0 : index
    %168 = vector.load %arg9[%167, %c0_46] : memref<8x32xf32, #tpu.memory_space<vmem>>, vector<1x32xf32>
    tpu.vector_store %arg9[%167, %c0_46], %166 {strides = array<i32>} : memref<8x32xf32, #tpu.memory_space<vmem>>, vector<1x32xf32>,
    %c8_i32_47 = arith.constant 8 : i32
    %c0_48 = arith.constant 0 : index
    %c0_49 = arith.constant 0 : index
    %169 = vector.load %arg7[%c0_48, %c0_49] : memref<8x32xf32, #tpu.memory_space<vmem>>, vector<8x32xf32>
    %c0_50 = arith.constant 0 : index
    %c0_51 = arith.constant 0 : index
    %170 = vector.load %arg8[%c0_50, %c0_51] : memref<8x32xf32, #tpu.memory_space<vmem>>, vector<8x32xf32>
    %c0_52 = arith.constant 0 : index
    %c0_53 = arith.constant 0 : index
    %171 = vector.load %arg9[%c0_52, %c0_53] : memref<8x32xf32, #tpu.memory_space<vmem>>, vector<8x32xf32>
    %172 = arith.subf %170, %171 : vector<8x32xf32>
    %173 = arith.mulf %169, %172 : vector<8x32xf32>
    %cst = arith.constant 0.000000e+00 : f32
    %174 = vector.broadcast %cst : f32 to vector<8x32xf32>
    %175 = arith.subf %174, %173 : vector<8x32xf32>
    %cst_54 = arith.constant 0.000000e+00 : f32
    %176 = vector.broadcast %cst_54 : f32 to vector<8x32xf32>
    %177 = arith.maximumf %175, %176 : vector<8x32xf32>
    %178 = math.absf %173 : vector<8x32xf32>
    %cst_55 = arith.constant 0.000000e+00 : f32
    %179 = vector.broadcast %cst_55 : f32 to vector<8x32xf32>
    %180 = arith.subf %179, %178 : vector<8x32xf32>
    %181 = math.exp %180 : vector<8x32xf32>
    %cst_56 = arith.constant 1.000000e+00 : f32
    %182 = vector.broadcast %cst_56 : f32 to vector<8x32xf32>
    %183 = arith.addf %182, %181 : vector<8x32xf32>
    %184 = math.log %183 : vector<8x32xf32>
    %185 = arith.addf %177, %184 : vector<8x32xf32>
    %186 = arith.mulf %169, %169 : vector<8x32xf32>
    %187 = arith.mulf %170, %170 : vector<8x32xf32>
    %188 = arith.addf %186, %187 : vector<8x32xf32>
    %189 = arith.mulf %171, %171 : vector<8x32xf32>
    %190 = arith.addf %188, %189 : vector<8x32xf32>
    %cst_57 = arith.constant 9.99999974E-6 : f32
    %191 = vector.broadcast %cst_57 : f32 to vector<8x32xf32>
    %192 = arith.mulf %191, %190 : vector<8x32xf32>
    %193 = arith.addf %185, %192 : vector<8x32xf32>
    %cst_58 = arith.constant dense<0.000000e+00> : vector<8xf32>
    %194 = vector.multi_reduction <add>, %193, %cst_58 [1] : vector<8x32xf32> to vector<8xf32>
    %cst_59 = arith.constant 3.125000e-02 : f32
    %195 = vector.broadcast %cst_59 : f32 to vector<8xf32>
    %196 = arith.mulf %194, %195 : vector<8xf32>
    %197 = vector.shape_cast %196 : vector<8xf32> to vector<1x8xf32>
    %c0_60 = arith.constant 0 : index
    %c0_61 = arith.constant 0 : index
    %198 = vector.load %arg6[%c0_60, %c0_61] : memref<1x8xf32, #tpu.memory_space<vmem>>, vector<1x8xf32>
    tpu.vector_store %arg6[%c0_60, %c0_61], %197 {strides = array<i32>} : memref<1x8xf32, #tpu.memory_space<vmem>>, vector<1x8xf32>,
    return
  }
  func.func @transform_0(%arg0: i32, %arg1: memref<8xi32, #tpu.memory_space<smem>>, %arg2: memref<8xi32, #tpu.memory_space<smem>>, %arg3: memref<8xi32, #tpu.memory_space<smem>>) -> (i32, i32) {
    %c0_i32 = arith.constant 0 : i32
    %c0_i32_0 = arith.constant 0 : i32
    %c0_i32_1 = arith.constant 0 : i32
    return %c0_i32, %c0_i32_0 : i32, i32
  }
  func.func @transform_1(%arg0: i32, %arg1: memref<8xi32, #tpu.memory_space<smem>>, %arg2: memref<8xi32, #tpu.memory_space<smem>>, %arg3: memref<8xi32, #tpu.memory_space<smem>>) -> (i32, i32) {
    %c0_i32 = arith.constant 0 : i32
    %c0_i32_0 = arith.constant 0 : i32
    %c0_i32_1 = arith.constant 0 : i32
    return %c0_i32, %c0_i32_0 : i32, i32
  }
  func.func @transform_2(%arg0: i32, %arg1: memref<8xi32, #tpu.memory_space<smem>>, %arg2: memref<8xi32, #tpu.memory_space<smem>>, %arg3: memref<8xi32, #tpu.memory_space<smem>>) -> (i32, i32) {
    %c0_i32 = arith.constant 0 : i32
    %c0_i32_0 = arith.constant 0 : i32
    return %c0_i32, %arg0 : i32, i32
  }
}

</mosaic_0001>

<llo_original>
// kernel: tpu_custom_call.1
$region0: #{tpu_custom_call.1}
  #allocation0 [shape = 'u32[]', space=smem, size = 0x4, offset = 0x4, fixed_abs, tag = 'smem constant byte address 0x4 - core index']
  #allocation1 [shape = 'u32[72,128]{1,0:T(1,128)}', space=vmem, size = 0x9000, scoped, tag = 'internal scratch']
  #allocation2 [shape = 'f32[8,32]{1,0:T(8,128)}', space=vmem, size = 0x1000, scoped, tag = 'scratch operand']
  #allocation3 [shape = 'f32[8,32]{1,0:T(8,128)}', space=vmem, size = 0x1000, scoped, tag = 'scratch operand']
  #allocation4 [shape = 'f32[8,32]{1,0:T(8,128)}', space=vmem, size = 0x1000, scoped, tag = 'scratch operand']
  #allocation5 [shape = 's32[1]{0}', space=sflag, size = 0x4, scoped, tag = 'scoped memory for tpu_custom_call.1']
  #allocation6 [shape = 'u8[512]{0}', space=smem, size = 0x200, scoped, tag = 'prefetched SMEM operand 0']
  #allocation7 [shape = 'u8[512]{0}', space=smem, size = 0x200, scoped, tag = 'prefetched SMEM operand 1']
  #allocation8 [shape = 'u8[512]{0}', space=smem, size = 0x200, scoped, tag = 'prefetched SMEM operand 2']
  %s0 = inlined_call_operand.vmem [shape: s32[8], index: 0, kind: input, shape index: {}]
  %s1 = inlined_call_operand.vmem [shape: s32[8], index: 1, kind: input, shape index: {}]
  %s2 = inlined_call_operand.vmem [shape: s32[8], index: 2, kind: input, shape index: {}]
  %s3 = inlined_call_operand.vmem [shape: f32[64,32], index: 3, kind: input, shape index: {}]
  %s4 = inlined_call_operand.vmem [shape: f32[64,32], index: 4, kind: input, shape index: {}]
  %s5 = inlined_call_operand.hbm [shape: f32[1,8], index: 5, kind: output, shape index: {}]
  %s6 = sld [smem:[#allocation0]]
  $region18: #{tpu_custom_call.1} parent=0
    _
  %s8 = ssub.s32 1, %s6
  %s9 = scalar_select 0, %s8, %s6
  %s11 = sshll.u32 %s0, 4
  %s12 = int_to_ptr.vmem [resolvable:$true] %s11
  %14 = dma.vmem_to_smem %s12, 16, [#allocation6], [#allocation5]
  %s16 = sshll.u32 %s1, 4
  %s17 = int_to_ptr.vmem [resolvable:$true] %s16
  %19 = dma.vmem_to_smem %s17, 16, [#allocation7], [#allocation5]
  %s21 = sshll.u32 %s2, 4
  %s22 = int_to_ptr.vmem [resolvable:$true] %s21
  %24 = dma.vmem_to_smem %s22, 16, [#allocation8], [#allocation5]
  %26 = dma.done [#allocation5], 48
  %27 = sfence
  $region1: #{tpu_custom_call.1} parent=0
    #allocation9 [shape = 'u8[512]{0}', space=vmem, size = 0x400, scoped, tag = 'output window, operand 0, single buffered']
    #allocation10 [shape = 's32[1]{0}', space=sflag, size = 0x4, scoped, tag = 'scoped memory for tpu_custom_call.1']
    %28 = vsyncpa [#allocation10], 0
    // Predicated region
    $region2: #{tpu_custom_call.1} parent=1 // pred_check
      _
    $region3: #{tpu_custom_call.1} parent=1 // pred_check_branch
      %30 = sbr.rel (0) target = $region5
    $region4: #{tpu_custom_call.1} parent=1 // pred_region
      _
    $region5: #{tpu_custom_call.1} parent=1 // pred_fallthru
      _
    // Predicated region
    $region6: #{tpu_custom_call.1} parent=1 // pred_check
      _
    $region7: #{tpu_custom_call.1} parent=1 // pred_check_branch
      %32 = sbr.rel (0) target = $region9
    $region8: #{tpu_custom_call.1} parent=1 // pred_region
      _
    $region9: #{tpu_custom_call.1} parent=1 // pred_fallthru
      _
    %s33 = smul.u32 0, 8
    %s34 = sld [smem:[#allocation6 + %s33]]
    %s35 = scalar_lea.vmem %s3, %s34
    %v36 = vld [vmem:[%s35] sm:$0x1]
    %vm37 = vcmask 253952
    %38 = vst.msk [vmem:[#allocation2] sm:$0x1] %vm37, %v36
    %s39 = sld [smem:[#allocation7 + %s33]]
    %s40 = scalar_lea.vmem %s4, %s39
    %v41 = vld [vmem:[%s40] sm:$0x1]
    %42 = vst.msk [vmem:[#allocation3] sm:$0x1] %vm37, %v41
    %s43 = sld [smem:[#allocation8 + %s33]]
    %s44 = scalar_lea.vmem %s4, %s43
    %v45 = vld [vmem:[%s44] sm:$0x1]
    %46 = vst.msk [vmem:[#allocation4] sm:$0x1] %vm37, %v45
    %s47 = sadd.s32 %s33, 1
    %s48 = sld [smem:[#allocation6 + %s47]]
    %s49 = scalar_lea.vmem %s3, %s48
    %v50 = vld [vmem:[%s49] sm:$0x1]
    %51 = vst.msk [vmem:[#allocation2 + $0x1] sm:$0x1] %vm37, %v50
    %s52 = sld [smem:[#allocation7 + %s47]]
    %s53 = scalar_lea.vmem %s4, %s52
    %v54 = vld [vmem:[%s53] sm:$0x1]
    %55 = vst.msk [vmem:[#allocation3 + $0x1] sm:$0x1] %vm37, %v54
    %s56 = sld [smem:[#allocation8 + %s47]]
    %s57 = scalar_lea.vmem %s4, %s56
    %v58 = vld [vmem:[%s57] sm:$0x1]
    %59 = vst.msk [vmem:[#allocation4 + $0x1] sm:$0x1] %vm37, %v58
    %s60 = sadd.s32 %s33, 2
    %s61 = sld [smem:[#allocation6 + %s60]]
    %s62 = scalar_lea.vmem %s3, %s61
    %v63 = vld [vmem:[%s62] sm:$0x1]
    %64 = vst.msk [vmem:[#allocation2 + $0x2] sm:$0x1] %vm37, %v63
    %s65 = sld [smem:[#allocation7 + %s60]]
    %s66 = scalar_lea.vmem %s4, %s65
    %v67 = vld [vmem:[%s66] sm:$0x1]
    %68 = vst.msk [vmem:[#allocation3 + $0x2] sm:$0x1] %vm37, %v67
    %s69 = sld [smem:[#allocation8 + %s60]]
    %s70 = scalar_lea.vmem %s4, %s69
    %v71 = vld [vmem:[%s70] sm:$0x1]
    %72 = vst.msk [vmem:[#allocation4 + $0x2] sm:$0x1] %vm37, %v71
    %s73 = sadd.s32 %s33, 3
    %s74 = sld [smem:[#allocation6 + %s73]]
    %s75 = scalar_lea.vmem %s3, %s74
    %v76 = vld [vmem:[%s75] sm:$0x1]
    %77 = vst.msk [vmem:[#allocation2 + $0x3] sm:$0x1] %vm37, %v76
    %s78 = sld [smem:[#allocation7 + %s73]]
    %s79 = scalar_lea.vmem %s4, %s78
    %v80 = vld [vmem:[%s79] sm:$0x1]
    %81 = vst.msk [vmem:[#allocation3 + $0x3] sm:$0x1] %vm37, %v80
    %s82 = sld [smem:[#allocation8 + %s73]]
    %s83 = scalar_lea.vmem %s4, %s82
    %v84 = vld [vmem:[%s83] sm:$0x1]
    %85 = vst.msk [vmem:[#allocation4 + $0x3] sm:$0x1] %vm37, %v84
    %s86 = sadd.s32 %s33, 4
    %s87 = sld [smem:[#allocation6 + %s86]]
    %s88 = scalar_lea.vmem %s3, %s87
    %v89 = vld [vmem:[%s88] sm:$0x1]
    %90 = vst.msk [vmem:[#allocation2 + $0x4] sm:$0x1] %vm37, %v89
    %s91 = sld [smem:[#allocation7 + %s86]]
    %s92 = scalar_lea.vmem %s4, %s91
    %v93 = vld [vmem:[%s92] sm:$0x1]
    %94 = vst.msk [vmem:[#allocation3 + $0x4] sm:$0x1] %vm37, %v93
    %s95 = sld [smem:[#allocation8 + %s86]]
    %s96 = scalar_lea.vmem %s4, %s95
    %v97 = vld [vmem:[%s96] sm:$0x1]
    %98 = vst.msk [vmem:[#allocation4 + $0x4] sm:$0x1] %vm37, %v97
    %s99 = sadd.s32 %s33, 5
    %s100 = sld [smem:[#allocation6 + %s99]]
    %s101 = scalar_lea.vmem %s3, %s100
    %v102 = vld [vmem:[%s101] sm:$0x1]
    %103 = vst.msk [vmem:[#allocation2 + $0x5] sm:$0x1] %vm37, %v102
    %s104 = sld [smem:[#allocation7 + %s99]]
    %s105 = scalar_lea.vmem %s4, %s104
    %v106 = vld [vmem:[%s105] sm:$0x1]
    %107 = vst.msk [vmem:[#allocation3 + $0x5] sm:$0x1] %vm37, %v106
    %s108 = sld [smem:[#allocation8 + %s99]]
    %s109 = scalar_lea.vmem %s4, %s108
    %v110 = vld [vmem:[%s109] sm:$0x1]
    %111 = vst.msk [vmem:[#allocation4 + $0x5] sm:$0x1] %vm37, %v110
    %s112 = sadd.s32 %s33, 6
    %s113 = sld [smem:[#allocation6 + %s112]]
    %s114 = scalar_lea.vmem %s3, %s113
    %v115 = vld [vmem:[%s114] sm:$0x1]
    %116 = vst.msk [vmem:[#allocation2 + $0x6] sm:$0x1] %vm37, %v115
    %s117 = sld [smem:[#allocation7 + %s112]]
    %s118 = scalar_lea.vmem %s4, %s117
    %v119 = vld [vmem:[%s118] sm:$0x1]
    %120 = vst.msk [vmem:[#allocation3 + $0x6] sm:$0x1] %vm37, %v119
    %s121 = sld [smem:[#allocation8 + %s112]]
    %s122 = scalar_lea.vmem %s4, %s121
    %v123 = vld [vmem:[%s122] sm:$0x1]
    %124 = vst.msk [vmem:[#allocation4 + $0x6] sm:$0x1] %vm37, %v123
    %s125 = sadd.s32 %s33, 7
    %s126 = sld [smem:[#allocation6 + %s125]]
    %s127 = scalar_lea.vmem %s3, %s126
    %v128 = vld [vmem:[%s127] sm:$0x1]
    %129 = vst.msk [vmem:[#allocation2 + $0x7] sm:$0x1] %vm37, %v128
    %s130 = sld [smem:[#allocation7 + %s125]]
    %s131 = scalar_lea.vmem %s4, %s130
    %v132 = vld [vmem:[%s131] sm:$0x1]
    %133 = vst.msk [vmem:[#allocation3 + $0x7] sm:$0x1] %vm37, %v132
    %s134 = sld [smem:[#allocation8 + %s125]]
    %s135 = scalar_lea.vmem %s4, %s134
    %v136 = vld [vmem:[%s135] sm:$0x1]
    %137 = vst.msk [vmem:[#allocation4 + $0x7] sm:$0x1] %vm37, %v136
    %v138 = vld [vmem:[#allocation2] sm:$0xff]
    %v139 = vld [vmem:[#allocation3] sm:$0xff]
    %v140 = vld [vmem:[#allocation4] sm:$0xff]
    %v141 = vsub.f32 %v139, %v140
    %v142 = vmul.f32 %v138, %v141
    %v143 = vsub.f32 0.0, %v142
    %v144 = vmax.f32 %v143, 0.0
    %v145 = vand.u32 2147483647, %v142
    %v146 = vsub.f32 0.0, %v145
    %v147 = vmul.f32 %v146, 1.442695
    %v148 = vpow.pop %v147
    %v149 = vadd.f32 %v148, 1.0
    %v150 = vlog2.pop %v149
    %v151 = vmul.f32 %v150, 0.6931472
    %v152 = vadd.f32 %v144, %v151
    %v153 = vmul.f32 %v138, %v138
    %v154 = vmul.f32 %v139, %v139
    %v155 = vadd.f32 %v153, %v154
    %v156 = vmul.f32 %v140, %v140
    %v157 = vadd.f32 %v155, %v156
    %v158 = vmul.f32 %v157, 1e-05
    %v159 = vadd.f32 %v152, %v158
    %vm160 = vcmask 261120
    %v161 = vsel %vm160, %v159, 0.0
    %162 = vadd.xlane.f32.xlu0 %v161
    %v163 = vpop.xlane.xlu0 %162
    %v164 = vmul.f32 %v163, 0.03125
    %v166 = vlaneseq
    %v167 = vand.u32 %v166, 127
    %v168 = vperm.slane %v164, %v167
    %vm170 = vcmask 57344
    %171 = vst.msk [vmem:[#allocation9] sm:$0x1] %vm170, %v168
    // Predicated region
    $region10: #{tpu_custom_call.1} parent=1 // pred_check
      _
    $region11: #{tpu_custom_call.1} parent=1 // pred_check_branch
      %173 = sbr.rel (0) target = $region13
    $region12: #{tpu_custom_call.1} parent=1 // pred_region
      %175 = vsyncadd [#allocation10], 0
      %s177 = sshll.u32 [#allocation9], 4
      %s178 = int_to_ptr.vmem [resolvable:$true] %s177
      %s179 = sshll.u32 %s5, 4
      %s180 = int_to_ptr.hbm [resolvable:$true] %s179
      %182 = dma.vmem_to_hbm [thread:$0]  %s178, 16, %s180, [#allocation10]
    $region13: #{tpu_custom_call.1} parent=1 // pred_fallthru
      _
    // Predicated region
    $region14: #{tpu_custom_call.1} parent=1 // pred_check
      _
    $region15: #{tpu_custom_call.1} parent=1 // pred_check_branch
      %184 = sbr.rel (0) target = $region17
    $region16: #{tpu_custom_call.1} parent=1 // pred_region
      %186 = dma.done [#allocation10], 16
    $region17: #{tpu_custom_call.1} parent=1 // pred_fallthru
      _
    %187 = vsyncpa [#allocation10], 1

</llo_original>
